<compile_context>
chip_gen: v6e
topology: v6e:2x2x1
jax: 0.10.0
libtpu: 0.0.40
codegen_flags: <defaults>
</compile_context>

<pallas_src>
import math

import jax
import jax.numpy as jnp
from jax.experimental import pallas as pl
from jax.experimental.pallas import tpu as pltpu

LANE = 128      # lane width (last dim tiling)
SUBLANE = 8     # sublane width (second-to-last dim tiling)


def _round_up(x, m):
    return ((x + m - 1) // m) * m


# ---------------------------------------------------------------------------
# Kernel: fused Linear -> ReLU -> Linear -> ReLU -> Linear -> Tanh
# ---------------------------------------------------------------------------
def mlp_actor_kernel(x_ref, w_ref, b_ref, o_ref):
    # x_ref: [TB, obs_dim] f32  (un-padded obs tile; ragged last tile masked)
    # w_ref: [3, P, P]     bf16 (VMEM-resident weight slab, zero padded)
    # b_ref: [3, 1, P]     f32  (VMEM-resident bias slab, zero padded)
    # o_ref: [TB, P]       bf16 (lane-dense; act_dim sliced off outside)
    kdim = x_ref.shape[1]                       # obs_dim (static)
    x = x_ref[...].astype(jnp.bfloat16)         # cast in-kernel, not on host

    h = jnp.dot(x, w_ref[0, :kdim, :],
                preferred_element_type=jnp.float32) + b_ref[0]
    h = jnp.maximum(h, 0.0).astype(jnp.bfloat16)                 # ReLU

    h = jnp.dot(h, w_ref[1], preferred_element_type=jnp.float32) + b_ref[1]
    h = jnp.maximum(h, 0.0).astype(jnp.bfloat16)                 # ReLU

    y = jnp.dot(h, w_ref[2], preferred_element_type=jnp.float32) + b_ref[2]
    o_ref[...] = jnp.tanh(y).astype(o_ref.dtype)                 # Tanh -> bf16


# ---------------------------------------------------------------------------
# Host-side packing + wrapper
# ---------------------------------------------------------------------------
def pack_params(params, obs_dim, act_dim, hidden_layers):
    """Pad every feature dim to a common lane-dense width P and pack the
    three layers into one bf16 weight slab + one f32 bias slab."""
    dims = [obs_dim] + list(hidden_layers) + [act_dim]
    assert len(dims) == 4, "kernel is written for exactly 2 hidden layers"
    P = max(_round_up(d, LANE) for d in dims)
    n_layers = len(dims) - 1  # 3

    w_slab = jnp.zeros((n_layers, P, P), jnp.bfloat16)
    b_slab = jnp.zeros((n_layers, 1, P), jnp.float32)
    for i in range(n_layers):
        w = params[f"w{i + 1}"]                       # [din, dout] f32
        b = params[f"b{i + 1}"].reshape(1, -1)        # [1, dout]  f32
        w_slab = w_slab.at[i, : w.shape[0], : w.shape[1]].set(
            w.astype(jnp.bfloat16))
        b_slab = b_slab.at[i, :, : b.shape[1]].set(b)
    return w_slab, b_slab, P


def _choose_batch_tile(B, max_tile):
    """Largest tile <= ~max_tile such that the last tile is never mostly
    padding: split B into ceil(B/max_tile) near-equal chunks, round to 8."""
    n_tiles = max(1, math.ceil(B / max_tile))
    return _round_up(math.ceil(B / n_tiles), SUBLANE)


def continuous_mlp_actor(obs, w_slab, b_slab, act_dim, *, batch_tile=4096):
    """obs: [B, obs_dim] f32. Returns [B, act_dim] f32 (bf16 kernel output)."""
    B, obs_dim = obs.shape
    n_layers, P, _ = w_slab.shape

    TB = _choose_batch_tile(B, batch_tile)
    grid = (math.ceil(B / TB),)   # ragged last tile handled by Pallas masking

    out = pl.pallas_call(
        mlp_actor_kernel,
        out_shape=jax.ShapeDtypeStruct((B, P), jnp.bfloat16),
        grid=grid,
        in_specs=[
            # obs tile: streamed / double-buffered over the batch grid.
            # Last block dim == full array dim, so no lane padding needed.
            pl.BlockSpec((TB, obs_dim), lambda i: (i, 0)),
            # weight + bias slabs: same block every step -> VMEM resident.
            # (Single-buffering them would only save ~100 KiB of VMEM we do
            #  not need, so default buffering is kept for compile robustness.)
            pl.BlockSpec((n_layers, P, P), lambda i: (0, 0, 0)),
            pl.BlockSpec((n_layers, 1, P), lambda i: (0, 0, 0)),
        ],
        out_specs=pl.BlockSpec((TB, P), lambda i: (i, 0)),
        compiler_params=pltpu.CompilerParams(
            dimension_semantics=("parallel",),      # megacore split on v7x
            vmem_limit_bytes=32 * 1024 * 1024,      # safe on v5e/v6e/v7x
        ),
    )(obs.astype(jnp.float32), w_slab, b_slab)

    return out[:, :act_dim].astype(jnp.float32)


# ---------------------------------------------------------------------------
# Parameter init + references
# ---------------------------------------------------------------------------
def init_params(key, obs_dim, act_dim, hidden_layers):
    """Deterministic synthetic init matching the module's layer shapes.
    Weights stored [in, out] so the kernel computes x @ W + b
    (== PyTorch x @ W.T + b with W [out, in])."""
    dims = [obs_dim] + list(hidden_layers) + [act_dim]
    params = {}
    keys = jax.random.split(key, len(dims) - 1)
    for i, (din, dout) in enumerate(zip(dims[:-1], dims[1:])):
        wk, bk = jax.random.split(keys[i])
        scale = 1.0 / jnp.sqrt(jnp.float32(din))
        params[f"w{i + 1}"] = jax.random.normal(wk, (din, dout), jnp.float32) * scale
        params[f"b{i + 1}"] = (
            jax.random.uniform(bk, (1, dout), jnp.float32, -0.05, 0.05))
    return params


def reference_forward_bf16(obs, w_slab, b_slab, act_dim):
    """Mirror of the kernel math (bf16 matmul inputs, f32 acc, bf16 output)."""
    obs_dim = obs.shape[1]
    x = obs.astype(jnp.bfloat16)
    h = jnp.maximum(
        jnp.dot(x, w_slab[0, :obs_dim, :],
                preferred_element_type=jnp.float32) + b_slab[0], 0.0
    ).astype(jnp.bfloat16)
    h = jnp.maximum(
        jnp.dot(h, w_slab[1], preferred_element_type=jnp.float32) + b_slab[1], 0.0
    ).astype(jnp.bfloat16)
    y = jnp.tanh(jnp.dot(h, w_slab[2], preferred_element_type=jnp.float32) + b_slab[2])
    y = y.astype(jnp.bfloat16).astype(jnp.float32)
    return y[:, :act_dim]


def reference_forward_f32(obs, params):
    """Pure-f32 reference of the original module forward."""
    h = jnp.maximum(obs @ params["w1"] + params["b1"], 0.0)
    h = jnp.maximum(h @ params["w2"] + params["b2"], 0.0)
    return jnp.tanh(h @ params["w3"] + params["b3"])


def _check(obs, params, w_slab, b_slab, act_dim):
    out = jax.block_until_ready(
        continuous_mlp_actor(obs, w_slab, b_slab, act_dim))
    assert out.shape == (obs.shape[0], act_dim)

    # Tight check vs. a reference that mirrors the kernel numerics exactly.
    ref_bf16 = reference_forward_bf16(obs, w_slab, b_slab, act_dim)
    assert jnp.allclose(out, ref_bf16, atol=1.5e-2, rtol=1e-2), (
        jnp.max(jnp.abs(out - ref_bf16)))

    # Loose semantic check vs. the full-f32 module forward
    # (bf16 MXU inputs + bf16 output -> tolerance widened from 1e-5).
    ref_f32 = reference_forward_f32(obs, params)
    assert jnp.allclose(out, ref_f32, atol=4e-2, rtol=0.0), (
        jnp.max(jnp.abs(out - ref_f32)))
    return out


if __name__ == "__main__":
    # Small shapes consistent with the module: observation_space.shape[0]=16,
    # action_space.shape[0]=8, hidden_layers=[32, 32], batch=4.
    key = jax.random.PRNGKey(0)
    k_obs, k_obs2, k_params = jax.random.split(key, 3)

    obs_dim, act_dim = 16, 8
    hidden_layers = [32, 32]

    params = init_params(k_params, obs_dim, act_dim, hidden_layers)
    w_slab, b_slab, _ = pack_params(params, obs_dim, act_dim, hidden_layers)

    # Primary tiny-batch check (B=4, exercises the masked ragged tile).
    obs = jax.random.normal(k_obs, (4, obs_dim), jnp.float32)
    _check(obs, params, w_slab, b_slab, act_dim)

    # Second check with a non-8-aligned batch (B=19), same masking path.
    obs2 = jax.random.normal(k_obs2, (19, obs_dim), jnp.float32)
    _check(obs2, params, w_slab, b_slab, act_dim)

    print("KERNEL_OK")
</pallas_src>

<mosaic_0001>
module attributes {stable_mosaic.version = 11 : i64} {
  func.func @mlp_actor_kernel(%arg0: i32, %arg1: memref<8x16xf32, #tpu.memory_space<vmem>>, %arg2: memref<3x128x128xbf16, #tpu.memory_space<vmem>>, %arg3: memref<3x1x128xf32, #tpu.memory_space<vmem>>, %arg4: memref<8x128xbf16, #tpu.memory_space<vmem>>) attributes {dimension_semantics = [#tpu.dimension_semantics<parallel>], iteration_bounds = array<i64: 1>, scalar_prefetch = 0 : i64, scratch_operands = 0 : i64, tpu.core_type = #tpu.core_type<tc>, window_params = [{transform_indices = @transform_0, window_bounds = array<i64: 8, 16>}, {pipeline_mode = #tpu.pipeline_mode<synchronous>, transform_indices = @transform_1, window_bounds = array<i64: 3, 128, 128>}, {pipeline_mode = #tpu.pipeline_mode<synchronous>, transform_indices = @transform_2, window_bounds = array<i64: 3, 1, 128>}, {transform_indices = @transform_3, window_bounds = array<i64: 8, 128>}]} {
    %c0 = arith.constant 0 : index
    %c0_0 = arith.constant 0 : index
    %0 = vector.load %arg1[%c0, %c0_0] : memref<8x16xf32, #tpu.memory_space<vmem>>, vector<8x16xf32>
    %1 = arith.truncf %0 : vector<8x16xf32> to vector<8x16xbf16>
    %c0_1 = arith.constant 0 : index
    %c0_2 = arith.constant 0 : index
    %c0_3 = arith.constant 0 : index
    %2 = vector.load %arg2[%c0_1, %c0_2, %c0_3] : memref<3x128x128xbf16, #tpu.memory_space<vmem>>, vector<1x16x128xbf16>
    %3 = vector.shape_cast %2 : vector<1x16x128xbf16> to vector<16x128xbf16>
    %cst = arith.constant dense<0.000000e+00> : vector<8x128xf32>
    %4 = tpu.matmul %1, %3, %cst {dimension_numbers = #tpu.dot_dimension_numbers<[1], [0], [0], [1], [0, 0, 1, 1], [], []>} : vector<8x16xbf16>, vector<16x128xbf16>, vector<8x128xf32> -> vector<8x128xf32>
    %c0_4 = arith.constant 0 : index
    %c0_5 = arith.constant 0 : index
    %c0_6 = arith.constant 0 : index
    %5 = vector.load %arg3[%c0_4, %c0_5, %c0_6] : memref<3x1x128xf32, #tpu.memory_space<vmem>>, vector<1x1x128xf32>
    %6 = vector.shape_cast %5 : vector<1x1x128xf32> to vector<1x128xf32>
    %7 = vector.broadcast %6 : vector<1x128xf32> to vector<8x128xf32>
    %8 = arith.addf %4, %7 : vector<8x128xf32>
    %cst_7 = arith.constant 0.000000e+00 : f32
    %9 = vector.broadcast %cst_7 : f32 to vector<8x128xf32>
    %10 = arith.maximumf %8, %9 : vector<8x128xf32>
    %11 = arith.truncf %10 : vector<8x128xf32> to vector<8x128xbf16>
    %c1 = arith.constant 1 : index
    %c0_8 = arith.constant 0 : index
    %c0_9 = arith.constant 0 : index
    %12 = vector.load %arg2[%c1, %c0_8, %c0_9] : memref<3x128x128xbf16, #tpu.memory_space<vmem>>, vector<1x128x128xbf16>
    %13 = vector.shape_cast %12 : vector<1x128x128xbf16> to vector<128x128xbf16>
    %cst_10 = arith.constant dense<0.000000e+00> : vector<8x128xf32>
    %14 = tpu.matmul %11, %13, %cst_10 {dimension_numbers = #tpu.dot_dimension_numbers<[1], [0], [0], [1], [0, 0, 1, 1], [], []>} : vector<8x128xbf16>, vector<128x128xbf16>, vector<8x128xf32> -> vector<8x128xf32>
    %c1_11 = arith.constant 1 : index
    %c0_12 = arith.constant 0 : index
    %c0_13 = arith.constant 0 : index
    %15 = vector.load %arg3[%c1_11, %c0_12, %c0_13] : memref<3x1x128xf32, #tpu.memory_space<vmem>>, vector<1x1x128xf32>
    %16 = vector.shape_cast %15 : vector<1x1x128xf32> to vector<1x128xf32>
    %17 = vector.broadcast %16 : vector<1x128xf32> to vector<8x128xf32>
    %18 = arith.addf %14, %17 : vector<8x128xf32>
    %cst_14 = arith.constant 0.000000e+00 : f32
    %19 = vector.broadcast %cst_14 : f32 to vector<8x128xf32>
    %20 = arith.maximumf %18, %19 : vector<8x128xf32>
    %21 = arith.truncf %20 : vector<8x128xf32> to vector<8x128xbf16>
    %c2 = arith.constant 2 : index
    %c0_15 = arith.constant 0 : index
    %c0_16 = arith.constant 0 : index
    %22 = vector.load %arg2[%c2, %c0_15, %c0_16] : memref<3x128x128xbf16, #tpu.memory_space<vmem>>, vector<1x128x128xbf16>
    %23 = vector.shape_cast %22 : vector<1x128x128xbf16> to vector<128x128xbf16>
    %cst_17 = arith.constant dense<0.000000e+00> : vector<8x128xf32>
    %24 = tpu.matmul %21, %23, %cst_17 {dimension_numbers = #tpu.dot_dimension_numbers<[1], [0], [0], [1], [0, 0, 1, 1], [], []>} : vector<8x128xbf16>, vector<128x128xbf16>, vector<8x128xf32> -> vector<8x128xf32>
    %c2_18 = arith.constant 2 : index
    %c0_19 = arith.constant 0 : index
    %c0_20 = arith.constant 0 : index
    %25 = vector.load %arg3[%c2_18, %c0_19, %c0_20] : memref<3x1x128xf32, #tpu.memory_space<vmem>>, vector<1x1x128xf32>
    %26 = vector.shape_cast %25 : vector<1x1x128xf32> to vector<1x128xf32>
    %27 = vector.broadcast %26 : vector<1x128xf32> to vector<8x128xf32>
    %28 = arith.addf %24, %27 : vector<8x128xf32>
    %29 = math.tanh %28 : vector<8x128xf32>
    %30 = arith.truncf %29 : vector<8x128xf32> to vector<8x128xbf16>
    %c0_21 = arith.constant 0 : index
    %c0_22 = arith.constant 0 : index
    %31 = vector.load %arg4[%c0_21, %c0_22] : memref<8x128xbf16, #tpu.memory_space<vmem>>, vector<8x128xbf16>
    tpu.vector_store %arg4[%c0_21, %c0_22], %30 {strides = array<i32>} : memref<8x128xbf16, #tpu.memory_space<vmem>>, vector<8x128xbf16>,
    return
  }
  func.func @transform_0(%arg0: i32) -> (i32, i32) {
    %c0_i32 = arith.constant 0 : i32
    %c0_i32_0 = arith.constant 0 : i32
    return %arg0, %c0_i32 : i32, i32
  }
  func.func @transform_1(%arg0: i32) -> (i32, i32, i32) {
    %c0_i32 = arith.constant 0 : i32
    %c0_i32_0 = arith.constant 0 : i32
    %c0_i32_1 = arith.constant 0 : i32
    %c0_i32_2 = arith.constant 0 : i32
    return %c0_i32, %c0_i32_0, %c0_i32_1 : i32, i32, i32
  }
  func.func @transform_2(%arg0: i32) -> (i32, i32, i32) {
    %c0_i32 = arith.constant 0 : i32
    %c0_i32_0 = arith.constant 0 : i32
    %c0_i32_1 = arith.constant 0 : i32
    %c0_i32_2 = arith.constant 0 : i32
    return %c0_i32, %c0_i32_0, %c0_i32_1 : i32, i32, i32
  }
  func.func @transform_3(%arg0: i32) -> (i32, i32) {
    %c0_i32 = arith.constant 0 : i32
    %c0_i32_0 = arith.constant 0 : i32
    return %arg0, %c0_i32 : i32, i32
  }
}

</mosaic_0001>

<llo_original>
// kernel: tpu_custom_call.1
$region0: #{tpu_custom_call.1}
  #allocation0 [shape = 'u32[]', space=smem, size = 0x4, offset = 0x4, fixed_abs, tag = 'smem constant byte address 0x4 - core index']
  #allocation1 [shape = 'u32[144,128]{1,0:T(1,128)}', space=vmem, size = 0x12000, scoped, tag = 'internal scratch']
  %s0 = inlined_call_operand.hbm [shape: f32[4,16], index: 0, kind: input, shape index: {}]
  %s1 = inlined_call_operand.hbm [shape: bf16[3,128,128], index: 1, kind: input, shape index: {}]
  %s2 = inlined_call_operand.vmem [shape: f32[3,1,128], index: 2, kind: input, shape index: {}]
  %s3 = inlined_call_operand.hbm [shape: bf16[4,128], index: 3, kind: output, shape index: {}]
  %s4 = sld [smem:[#allocation0]]
  $region30: #{tpu_custom_call.1} parent=0
    _
  %s6 = ssub.s32 1, %s4
  %s7 = scalar_select 0, %s6, %s4
  $region1: #{tpu_custom_call.1} parent=0
    #allocation2 [shape = 'u8[4096]{0}', space=vmem, size = 0x1000, scoped, tag = 'input window, operand 0, single buffered']
    #allocation3 [shape = 's32[1]{0}', space=sflag, size = 0x4, scoped, tag = 'scoped memory for tpu_custom_call.1']
    #allocation4 [shape = 's32[1]{0}', space=sflag, size = 0x4, scoped, tag = 'scoped memory for tpu_custom_call.1']
    #allocation5 [shape = 'u8[98304]{0}', space=vmem, size = 0x18000, scoped, tag = 'input window, operand 1, single buffered']
    #allocation6 [shape = 's32[1]{0}', space=sflag, size = 0x4, scoped, tag = 'scoped memory for tpu_custom_call.1']
    #allocation7 [shape = 'u8[2048]{0}', space=vmem, size = 0x800, scoped, tag = 'output window, operand 0, single buffered']
    %8 = vsyncpa [#allocation3], 0
    %9 = vsyncpa [#allocation6], 0
    %10 = vsyncpa [#allocation4], 0
    // Predicated region
    $region2: #{tpu_custom_call.1} parent=1 // pred_check
      _
    $region3: #{tpu_custom_call.1} parent=1 // pred_check_branch
      %12 = sbr.rel (0) target = $region5
    $region4: #{tpu_custom_call.1} parent=1 // pred_region
      %s14 = ssub.s32 128, 64
      %15 = vsyncadd [#allocation3], %s14
      %s16 = sshll.u32 [#allocation2], 4
      %s17 = int_to_ptr.vmem [resolvable:$true] %s16
      %22 = dma.hbm_to_vmem [thread:$0]  %s0, 64, %s17, [#allocation3], 64, 64, 4
    $region5: #{tpu_custom_call.1} parent=1 // pred_fallthru
      _
    // Predicated region
    $region6: #{tpu_custom_call.1} parent=1 // pred_check
      _
    $region7: #{tpu_custom_call.1} parent=1 // pred_check_branch
      %24 = sbr.rel (0) target = $region9
    $region8: #{tpu_custom_call.1} parent=1 // pred_region
      %s26 = ssub.s32 3072, 3072
      %27 = vsyncadd [#allocation6], %s26
      %s28 = sshll.u32 [#allocation5], 4
      %s29 = int_to_ptr.vmem [resolvable:$true] %s28
      %34 = dma.hbm_to_vmem [thread:$0]  %s1, 3072, %s29, [#allocation6], 64, 64, 4
    $region9: #{tpu_custom_call.1} parent=1 // pred_fallthru
      _
    // Predicated region
    $region10: #{tpu_custom_call.1} parent=1 // pred_check
      _
    $region11: #{tpu_custom_call.1} parent=1 // pred_check_branch
      %36 = sbr.rel (0) target = $region13
    $region12: #{tpu_custom_call.1} parent=1 // pred_region
      _
    $region13: #{tpu_custom_call.1} parent=1 // pred_fallthru
      _
    // Predicated region
    $region14: #{tpu_custom_call.1} parent=1 // pred_check
      _
    $region15: #{tpu_custom_call.1} parent=1 // pred_check_branch
      %38 = sbr.rel (0) target = $region17
    $region16: #{tpu_custom_call.1} parent=1 // pred_region
      %39 = dma.done [#allocation3], 128
    $region17: #{tpu_custom_call.1} parent=1 // pred_fallthru
      _
    // Predicated region
    $region18: #{tpu_custom_call.1} parent=1 // pred_check
      _
    $region19: #{tpu_custom_call.1} parent=1 // pred_check_branch
      %41 = sbr.rel (0) target = $region21
    $region20: #{tpu_custom_call.1} parent=1 // pred_region
      %42 = dma.done [#allocation6], 3072
    $region21: #{tpu_custom_call.1} parent=1 // pred_fallthru
      _
    %v44 = vld [vmem:[#allocation2] sm:$0xff]
    %v45 = vpack.c.bf16 %v44, %v44
    %v46 = vld [vmem:[#allocation5] sm:$0xf]
    %v47 = vld [vmem:[#allocation5 + $0x4] sm:$0xf]
    %v48 = vld [vmem:[%s2] sm:$0x1]
    %v50 = vlaneseq
    %v51 = vshrl.u32 %v50, 7
    %v52 = vsub.s32 0, %v51
    %v53 = vrot.slane %v48, %v52
    %v57 = vunpack.c.l.b16 %v46
    %v58 = vunpack.c.l.b16 %v47
    %v59 = vpack.c.b16 %v58, %v57
    %vm61 = vcmask 130048
    %v63 = vsel %vm61, %v45, 0
    %65 = vmatprep.subr.bf16.mxu0 0
    %66 = vmatpush1.bf16.msra.mxu0 0
    %67 = vmatprep.subr.bf16.mxu0 0
    %68 = vmatpush1.bf16.msra.mxu0 0
    %69 = vmatprep.subr.bf16.mxu0 0
    %70 = vmatpush1.bf16.msra.mxu0 0
    %71 = vmatprep.subr.bf16.mxu0 0
    %72 = vmatpush1.bf16.msra.mxu0 0
    %73 = vmatprep.subr.bf16.mxu0 0
    %74 = vmatpush1.bf16.msra.mxu0 0
    %75 = vmatprep.subr.bf16.mxu0 0
    %76 = vmatpush1.bf16.msra.mxu0 0
    %77 = vmatprep.subr.bf16.mxu0 0
    %78 = vmatpush1.bf16.msra.mxu0 0
    %79 = vmatprep.subr.bf16.mxu0 0
    %80 = vmatpush1.bf16.msra.mxu0 %v59
    %81 = vmatprep.subr.bf16.mxu0 0
    %82 = vmatpush2.bf16.msra.mxu0 0
    %83 = vmatprep.subr.bf16.mxu0 0
    %84 = vmatpush2.bf16.msra.mxu0 0
    %85 = vmatprep.subr.bf16.mxu0 0
    %86 = vmatpush2.bf16.msra.mxu0 0
    %87 = vmatprep.subr.bf16.mxu0 0
    %88 = vmatpush2.bf16.msra.mxu0 0
    %89 = vmatprep.subr.bf16.mxu0 0
    %90 = vmatpush2.bf16.msra.mxu0 0
    %91 = vmatprep.subr.bf16.mxu0 0
    %92 = vmatpush2.bf16.msra.mxu0 0
    %93 = vmatprep.subr.bf16.mxu0 0
    %94 = vmatpush2.bf16.msra.mxu0 0
    %95 = vmatprep.subr.bf16.mxu0 0
    %96 = vmatpush2.bf16.msra.mxu0 0
    %97 = vmatprep.mubr.bf16.mxu0 0
    %98 = vmatmul.mubr.bf16.gmra.mxu0 %v63
    %v99 = vpop.f32.mrf.mxu0
    %v100 = vadd.f32 %v53, %v99
    %v101 = vpop.f32.mrf.mxu0
    %v102 = vpop.f32.mrf.mxu0
    %v103 = vpop.f32.mrf.mxu0
    %104 = vdwg.mxu0
    %v105 = vmax.f32 %v100, 0.0
    %v106 = vpack.c.bf16 %v105, %v105
    %s107 = scalar_lea.vmem [#allocation5], 64
    %v108 = vld [vmem:[%s107] sm:$0xf]
    %v109 = vld [vmem:[%s107 + $0x4] sm:$0xf]
    %v110 = vld [vmem:[%s107 + $0x8] sm:$0xf]
    %v111 = vld [vmem:[%s107 + $0xc] sm:$0xf]
    %v112 = vld [vmem:[%s107 + $0x10] sm:$0xf]
    %v113 = vld [vmem:[%s107 + $0x14] sm:$0xf]
    %v114 = vld [vmem:[%s107 + $0x18] sm:$0xf]
    %v115 = vld [vmem:[%s107 + $0x1c] sm:$0xf]
    %v116 = vld [vmem:[%s107 + $0x20] sm:$0xf]
    %v117 = vld [vmem:[%s107 + $0x24] sm:$0xf]
    %v118 = vld [vmem:[%s107 + $0x28] sm:$0xf]
    %v119 = vld [vmem:[%s107 + $0x2c] sm:$0xf]
    %v120 = vld [vmem:[%s107 + $0x30] sm:$0xf]
    %v121 = vld [vmem:[%s107 + $0x34] sm:$0xf]
    %v122 = vld [vmem:[%s107 + $0x38] sm:$0xf]
    %v123 = vld [vmem:[%s107 + $0x3c] sm:$0xf]
    %s124 = scalar_lea.vmem %s2, 1
    %v125 = vld [vmem:[%s124] sm:$0x1]
    %v127 = vlaneseq
    %v128 = vshrl.u32 %v127, 7
    %v129 = vsub.s32 0, %v128
    %v130 = vrot.slane %v125, %v129
    %v148 = vunpack.c.l.b16 %v108
    %v149 = vunpack.c.l.b16 %v109
    %v150 = vunpack.c.l.b16 %v110
    %v151 = vunpack.c.l.b16 %v111
    %v152 = vunpack.c.l.b16 %v112
    %v153 = vunpack.c.l.b16 %v113
    %v154 = vunpack.c.l.b16 %v114
    %v155 = vunpack.c.l.b16 %v115
    %v156 = vunpack.c.l.b16 %v116
    %v157 = vunpack.c.l.b16 %v117
    %v158 = vunpack.c.l.b16 %v118
    %v159 = vunpack.c.l.b16 %v119
    %v160 = vunpack.c.l.b16 %v120
    %v161 = vunpack.c.l.b16 %v121
    %v162 = vunpack.c.l.b16 %v122
    %v163 = vunpack.c.l.b16 %v123
    %v164 = vpack.c.b16 %v149, %v148
    %v165 = vpack.c.b16 %v151, %v150
    %v166 = vpack.c.b16 %v153, %v152
    %v167 = vpack.c.b16 %v155, %v154
    %v168 = vpack.c.b16 %v157, %v156
    %v169 = vpack.c.b16 %v159, %v158
    %v170 = vpack.c.b16 %v161, %v160
    %v171 = vpack.c.b16 %v163, %v162
    %180 = vmatprep.subr.bf16.mxu0 0
    %181 = vmatpush1.bf16.msra.mxu0 %v171
    %182 = vmatprep.subr.bf16.mxu0 0
    %183 = vmatpush1.bf16.msra.mxu0 %v170
    %184 = vmatprep.subr.bf16.mxu0 0
    %185 = vmatpush1.bf16.msra.mxu0 %v169
    %186 = vmatprep.subr.bf16.mxu0 0
    %187 = vmatpush1.bf16.msra.mxu0 %v168
    %188 = vmatprep.subr.bf16.mxu0 0
    %189 = vmatpush1.bf16.msra.mxu0 %v167
    %190 = vmatprep.subr.bf16.mxu0 0
    %191 = vmatpush1.bf16.msra.mxu0 %v166
    %192 = vmatprep.subr.bf16.mxu0 0
    %193 = vmatpush1.bf16.msra.mxu0 %v165
    %194 = vmatprep.subr.bf16.mxu0 0
    %195 = vmatpush1.bf16.msra.mxu0 %v164
    %196 = vmatprep.subr.bf16.mxu0 0
    %197 = vmatpush2.bf16.msra.mxu0 0
    %198 = vmatprep.subr.bf16.mxu0 0
    %199 = vmatpush2.bf16.msra.mxu0 0
    %200 = vmatprep.subr.bf16.mxu0 0
    %201 = vmatpush2.bf16.msra.mxu0 0
    %202 = vmatprep.subr.bf16.mxu0 0
    %203 = vmatpush2.bf16.msra.mxu0 0
    %204 = vmatprep.subr.bf16.mxu0 0
    %205 = vmatpush2.bf16.msra.mxu0 0
    %206 = vmatprep.subr.bf16.mxu0 0
    %207 = vmatpush2.bf16.msra.mxu0 0
    %208 = vmatprep.subr.bf16.mxu0 0
    %209 = vmatpush2.bf16.msra.mxu0 0
    %210 = vmatprep.subr.bf16.mxu0 0
    %211 = vmatpush2.bf16.msra.mxu0 0
    %212 = vmatprep.mubr.bf16.mxu0 0
    %213 = vmatmul.mubr.bf16.gmra.mxu0 %v106
    %v214 = vpop.f32.mrf.mxu0
    %v215 = vadd.f32 %v130, %v214
    %v216 = vpop.f32.mrf.mxu0
    %v217 = vpop.f32.mrf.mxu0
    %v218 = vpop.f32.mrf.mxu0
    %219 = vdwg.mxu0
    %v220 = vmax.f32 %v215, 0.0
    %v221 = vpack.c.bf16 %v220, %v220
    %s222 = scalar_lea.vmem [#allocation5], 128
    %v223 = vld [vmem:[%s222] sm:$0xf]
    %v224 = vld [vmem:[%s222 + $0x4] sm:$0xf]
    %v225 = vld [vmem:[%s222 + $0x8] sm:$0xf]
    %v226 = vld [vmem:[%s222 + $0xc] sm:$0xf]
    %v227 = vld [vmem:[%s222 + $0x10] sm:$0xf]
    %v228 = vld [vmem:[%s222 + $0x14] sm:$0xf]
    %v229 = vld [vmem:[%s222 + $0x18] sm:$0xf]
    %v230 = vld [vmem:[%s222 + $0x1c] sm:$0xf]
    %v231 = vld [vmem:[%s222 + $0x20] sm:$0xf]
    %v232 = vld [vmem:[%s222 + $0x24] sm:$0xf]
    %v233 = vld [vmem:[%s222 + $0x28] sm:$0xf]
    %v234 = vld [vmem:[%s222 + $0x2c] sm:$0xf]
    %v235 = vld [vmem:[%s222 + $0x30] sm:$0xf]
    %v236 = vld [vmem:[%s222 + $0x34] sm:$0xf]
    %v237 = vld [vmem:[%s222 + $0x38] sm:$0xf]
    %v238 = vld [vmem:[%s222 + $0x3c] sm:$0xf]
    %s239 = scalar_lea.vmem %s2, 2
    %v240 = vld [vmem:[%s239] sm:$0x1]
    %v242 = vlaneseq
    %v243 = vshrl.u32 %v242, 7
    %v244 = vsub.s32 0, %v243
    %v245 = vrot.slane %v240, %v244
    %v263 = vunpack.c.l.b16 %v223
    %v264 = vunpack.c.l.b16 %v224
    %v265 = vunpack.c.l.b16 %v225
    %v266 = vunpack.c.l.b16 %v226
    %v267 = vunpack.c.l.b16 %v227
    %v268 = vunpack.c.l.b16 %v228
    %v269 = vunpack.c.l.b16 %v229
    %v270 = vunpack.c.l.b16 %v230
    %v271 = vunpack.c.l.b16 %v231
    %v272 = vunpack.c.l.b16 %v232
    %v273 = vunpack.c.l.b16 %v233
    %v274 = vunpack.c.l.b16 %v234
    %v275 = vunpack.c.l.b16 %v235
    %v276 = vunpack.c.l.b16 %v236
    %v277 = vunpack.c.l.b16 %v237
    %v278 = vunpack.c.l.b16 %v238
    %v279 = vpack.c.b16 %v264, %v263
    %v280 = vpack.c.b16 %v266, %v265
    %v281 = vpack.c.b16 %v268, %v267
    %v282 = vpack.c.b16 %v270, %v269
    %v283 = vpack.c.b16 %v272, %v271
    %v284 = vpack.c.b16 %v274, %v273
    %v285 = vpack.c.b16 %v276, %v275
    %v286 = vpack.c.b16 %v278, %v277
    %295 = vmatprep.subr.bf16.mxu0 0
    %296 = vmatpush1.bf16.msra.mxu0 %v286
    %297 = vmatprep.subr.bf16.mxu0 0
    %298 = vmatpush1.bf16.msra.mxu0 %v285
    %299 = vmatprep.subr.bf16.mxu0 0
    %300 = vmatpush1.bf16.msra.mxu0 %v284
    %301 = vmatprep.subr.bf16.mxu0 0
    %302 = vmatpush1.bf16.msra.mxu0 %v283
    %303 = vmatprep.subr.bf16.mxu0 0
    %304 = vmatpush1.bf16.msra.mxu0 %v282
    %305 = vmatprep.subr.bf16.mxu0 0
    %306 = vmatpush1.bf16.msra.mxu0 %v281
    %307 = vmatprep.subr.bf16.mxu0 0
    %308 = vmatpush1.bf16.msra.mxu0 %v280
    %309 = vmatprep.subr.bf16.mxu0 0
    %310 = vmatpush1.bf16.msra.mxu0 %v279
    %311 = vmatprep.subr.bf16.mxu0 0
    %312 = vmatpush2.bf16.msra.mxu0 0
    %313 = vmatprep.subr.bf16.mxu0 0
    %314 = vmatpush2.bf16.msra.mxu0 0
    %315 = vmatprep.subr.bf16.mxu0 0
    %316 = vmatpush2.bf16.msra.mxu0 0
    %317 = vmatprep.subr.bf16.mxu0 0
    %318 = vmatpush2.bf16.msra.mxu0 0
    %319 = vmatprep.subr.bf16.mxu0 0
    %320 = vmatpush2.bf16.msra.mxu0 0
    %321 = vmatprep.subr.bf16.mxu0 0
    %322 = vmatpush2.bf16.msra.mxu0 0
    %323 = vmatprep.subr.bf16.mxu0 0
    %324 = vmatpush2.bf16.msra.mxu0 0
    %325 = vmatprep.subr.bf16.mxu0 0
    %326 = vmatpush2.bf16.msra.mxu0 0
    %327 = vmatprep.mubr.bf16.mxu0 0
    %328 = vmatmul.mubr.bf16.gmra.mxu0 %v221
    %v329 = vpop.f32.mrf.mxu0
    %v330 = vadd.f32 %v245, %v329
    %v331 = vpop.f32.mrf.mxu0
    %v332 = vpop.f32.mrf.mxu0
    %v333 = vpop.f32.mrf.mxu0
    %334 = vdwg.mxu0
    %v335 = vtanh.pop %v330
    %v336 = vpack.c.bf16 %v335, %v335
    %v339 = vunpack.c.l.s4 1983009808
    %v340 = vunpack.c.0.s8 %v339
    %v341 = vlaneseq
    %v342 = vshrl.u32 %v341, 7
    %v343 = vsub.s32 %v340, %v342
    %v344 = vrot.slane %v336, %v343
    %v345 = vcombine.high %v344, %v344
    %348 = vst [vmem:[#allocation7] sm:$0x3] %v344
    %349 = vst [vmem:[#allocation7 + $0x2] sm:$0x3] %v345
    // Predicated region
    $region22: #{tpu_custom_call.1} parent=1 // pred_check
      _
    $region23: #{tpu_custom_call.1} parent=1 // pred_check_branch
      %351 = sbr.rel (0) target = $region25
    $region24: #{tpu_custom_call.1} parent=1 // pred_region
      %s353 = ssub.s32 64, 32
      %354 = vsyncadd [#allocation4], %s353
      %s355 = sshll.u32 [#allocation7], 4
      %s356 = int_to_ptr.vmem [resolvable:$true] %s355
      %361 = dma.vmem_to_hbm [thread:$0]  %s356, 32, %s3, [#allocation4], 32, 32, 2
    $region25: #{tpu_custom_call.1} parent=1 // pred_fallthru
      _
    // Predicated region
    $region26: #{tpu_custom_call.1} parent=1 // pred_check
      _
    $region27: #{tpu_custom_call.1} parent=1 // pred_check_branch
      %363 = sbr.rel (0) target = $region29
    $region28: #{tpu_custom_call.1} parent=1 // pred_region
      %364 = dma.done [#allocation4], 64
    $region29: #{tpu_custom_call.1} parent=1 // pred_fallthru
      _
    %365 = vsyncpa [#allocation3], 1
    %366 = vsyncpa [#allocation6], 1
    %367 = vsyncpa [#allocation4], 1

</llo_original>
